<compile_context>
chip_gen: v7x
topology: tpu7x:2x2x1
jax: 0.10.0
libtpu: 0.0.40
codegen_flags: <defaults>
</compile_context>

<pallas_src>
import jax
import jax.numpy as jnp
from jax.experimental import pallas as pl
from jax.experimental.pallas import tpu as pltpu


def _round_up(n, m):
    return ((n + m - 1) // m) * m


def _pad2d(a, rows, cols, dtype):
    a = a.astype(dtype)
    pr, pc = rows - a.shape[0], cols - a.shape[1]
    if pr or pc:
        a = jnp.pad(a, ((0, pr), (0, pc)))
    return a


def _vmem_capacity_bytes():
    try:
        cap = getattr(pltpu.get_tpu_info(), "vmem_capacity_bytes", None)
        if cap:
            return int(cap)
    except Exception:
        pass
    return 64 << 20  # conservative (v7x-sized) fallback


# -----------------------------------------------------------------------------
# Kernels
# -----------------------------------------------------------------------------
def _mlp_res_kernel(x_ref, w1_ref, b1_ref, w2_ref, b2_ref, o_ref, h_ref, acc_ref):
    """res_conn=True: out = ReLU(x @ W1 + b1) @ W2 + b2 + x   (dropout = id).

    Grid = (batch i, out-hidden n, hidden/K k), k innermost.
    h = ReLU(x @ W1 + b1) is computed once per batch tile (n == 0) into the
    bf16 h-cache; the second GEMM accumulates per (i, n) output tile in f32
    scratch over k with pl.when init/finalize.  Residual uses the f32 x tile.
    """
    n = pl.program_id(1)
    k = pl.program_id(2)
    bf = w2_ref.shape[0]          # hidden/K tile width (static)
    bn = w2_ref.shape[1]          # output/N tile width (static)
    koff = pl.multiple_of(k * bf, 128)

    @pl.when(n == 0)
    def _first_gemm():            # only on the first n-pass of each batch tile
        h = jnp.dot(x_ref[...].astype(jnp.bfloat16), w1_ref[...],
                    preferred_element_type=jnp.float32)
        h = jnp.maximum(h + b1_ref[...], 0.0)
        h_ref[:, pl.ds(koff, bf)] = h.astype(jnp.bfloat16)

    @pl.when(k == 0)
    def _init():
        acc_ref[...] = jnp.zeros_like(acc_ref)

    acc_ref[...] += jnp.dot(h_ref[:, pl.ds(koff, bf)], w2_ref[...],
                            preferred_element_type=jnp.float32)

    @pl.when(k == pl.num_programs(2) - 1)
    def _finalize():
        noff = pl.multiple_of(n * bn, 128)
        res = x_ref[:, pl.ds(noff, bn)]            # f32 residual slice
        o_ref[...] = (acc_ref[...] + b2_ref[...] + res).astype(o_ref.dtype)


def _mlp_kernel(x_ref, w1_ref, b1_ref, o_ref):
    """res_conn=False: out = ReLU(x @ W1 + b1)   (dropout = id)."""
    h = jnp.dot(x_ref[...], w1_ref[...], preferred_element_type=jnp.float32)
    o_ref[...] = jnp.maximum(h + b1_ref[...], 0.0).astype(o_ref.dtype)


# -----------------------------------------------------------------------------
# Tile planning
# -----------------------------------------------------------------------------
def _plan(B, input_dim, hidden_dim, res_conn, block_batch, block_feat, out_bytes):
    vmem_cap = _vmem_capacity_bytes()
    big = vmem_cap >= (96 << 20)                   # v5e / v6e: 128 MiB VMEM
    vmem_limit = (104 << 20) if big else (50 << 20)
    budget = int(vmem_limit * 0.9)

    hid128 = _round_up(hidden_dim, 128)
    bb0 = _round_up(block_batch if block_batch else (512 if big else 256), 16)
    bb0 = min(bb0, _round_up(B, 16))               # bf16 native tile: 16 rows

    if block_feat:                                  # caller pinned the tile
        th_cands = [min(_round_up(block_feat, 128), hid128)]
    else:
        th_cands = [hid128]                         # weight-resident fast path
        th_cands += [t for t in (512, 256, 128) if t < hid128]

    def need(bb, th, in_pad, hid_pad):
        if res_conn:
            return (2 * bb * in_pad * 4             # x f32, double buffered
                    + 2 * in_pad * th * 2           # W1 tile (bf16)
                    + 2 * th * th * 2               # W2 tile (bf16)
                    + 4 * th * 4                    # b1 + b2 tiles
                    + 2 * bb * th * out_bytes       # out tile
                    + bb * hid_pad * 2              # h-cache (bf16 scratch)
                    + bb * th * 4)                  # f32 accumulator
        return (2 * bb * in_pad * 2 + 2 * in_pad * th * 2
                + 2 * th * 4 + 2 * bb * th * out_bytes)

    for th in th_cands:
        hid_pad = _round_up(hid128, th)
        in_pad = hid_pad if res_conn else _round_up(input_dim, 128)
        bb = bb0
        while True:
            if need(bb, th, in_pad, hid_pad) <= budget:
                return bb, th, in_pad, hid_pad, vmem_limit
            if bb <= 16:
                break
            bb = max(16, _round_up(bb // 2, 16))
    th = th_cands[-1]                               # last resort
    hid_pad = _round_up(hid128, th)
    in_pad = hid_pad if res_conn else _round_up(input_dim, 128)
    return 16, th, in_pad, hid_pad, vmem_limit


# -----------------------------------------------------------------------------
# Wrapper
# -----------------------------------------------------------------------------
def mlp_forward(x, params, *, res_conn, dropout=0.0, training=False,
                block_batch=None, block_feat=None, out_dtype=None):
    """x: [B, input_dim].  params pre-transposed to (in, out):
       w1 (in, hid), b1 (1, hid); if res_conn also w2 (hid, hid), b2 (1, hid)."""
    # TODO(synk): training-mode dropout (p>0) via pltpu.prng_seed /
    #             pltpu.prng_random_bits Bernoulli masking in-kernel.
    del dropout, training          # nn.Dropout is identity in eval mode

    B, input_dim = x.shape
    hidden_dim = params["w1"].shape[1]
    if out_dtype is None:
        # bf16 writeback for the mem-bound single-GEMM path; f32 for residual.
        out_dtype = jnp.float32 if res_conn else jnp.bfloat16
    out_bytes = jnp.dtype(out_dtype).itemsize

    bb, th, in_pad, hid_pad, vmem_limit = _plan(
        B, input_dim, hidden_dim, res_conn, block_batch, block_feat, out_bytes)
    b_pad = _round_up(B, bb)
    grid_b = b_pad // bb
    grid_h = hid_pad // th

    w1 = _pad2d(params["w1"], in_pad, hid_pad, jnp.bfloat16)
    b1 = _pad2d(params["b1"], 1, hid_pad, jnp.float32)
    # When tiled, weights are re-streamed once per batch tile; resident -> 1x.
    weight_passes = 1 if grid_h == 1 else grid_b

    if res_conn:
        assert input_dim == hidden_dim, "residual requires input_dim == hidden_dim"
        xb = _pad2d(x, b_pad, in_pad, jnp.float32)          # f32: exact residual
        w2 = _pad2d(params["w2"], hid_pad, hid_pad, jnp.bfloat16)
        b2 = _pad2d(params["b2"], 1, hid_pad, jnp.float32)

        cost = pl.CostEstimate(
            flops=2 * b_pad * in_pad * hid_pad + 2 * b_pad * hid_pad * hid_pad,
            transcendentals=0,
            bytes_accessed=(xb.size * 4
                            + (w1.size * 2 + w2.size * 2) * weight_passes
                            + (b1.size + b2.size) * 4
                            + b_pad * hid_pad * out_bytes))

        # W1/b1 are only consumed on the n==0 pass; pin their block index for
        # n>0 so they are not re-streamed once per output tile.
        w1_map = lambda i, n, k: (0, jnp.where(n == 0, k, 0))

        out = pl.pallas_call(
            _mlp_res_kernel,
            out_shape=jax.ShapeDtypeStruct((b_pad, hid_pad), out_dtype),
            grid_spec=pltpu.PrefetchScalarGridSpec(
                num_scalar_prefetch=0,
                grid=(grid_b, grid_h, grid_h),
                in_specs=[
                    pl.BlockSpec((bb, in_pad), lambda i, n, k: (i, 0)),   # x f32
                    pl.BlockSpec((in_pad, th), w1_map),                   # W1
                    pl.BlockSpec((1, th), w1_map),                        # b1
                    pl.BlockSpec((th, th), lambda i, n, k: (k, n)),       # W2
                    pl.BlockSpec((1, th), lambda i, n, k: (0, n)),        # b2
                ],
                out_specs=pl.BlockSpec((bb, th), lambda i, n, k: (i, n)),
                scratch_shapes=[pltpu.VMEM((bb, hid_pad), jnp.bfloat16),  # h-cache
                                pltpu.VMEM((bb, th), jnp.float32)],       # acc
            ),
            # n must stay "arbitrary": the h-cache written at n==0 is consumed
            # by later n tiles of the same batch tile (cannot shard across TCs).
            compiler_params=pltpu.CompilerParams(
                dimension_semantics=("parallel", "arbitrary", "arbitrary"),
                vmem_limit_bytes=vmem_limit),
            cost_estimate=cost,
        )(xb, w1, b1, w2, b2)
    else:
        xb = _pad2d(x, b_pad, in_pad, jnp.bfloat16)
        cost = pl.CostEstimate(
            flops=2 * b_pad * in_pad * hid_pad,
            transcendentals=0,
            bytes_accessed=(xb.size * 2 + w1.size * 2 * weight_passes
                            + b1.size * 4 + b_pad * hid_pad * out_bytes))

        out = pl.pallas_call(
            _mlp_kernel,
            out_shape=jax.ShapeDtypeStruct((b_pad, hid_pad), out_dtype),
            grid_spec=pltpu.PrefetchScalarGridSpec(
                num_scalar_prefetch=0,
                grid=(grid_b, grid_h),
                in_specs=[
                    pl.BlockSpec((bb, in_pad), lambda i, n: (i, 0)),      # x
                    pl.BlockSpec((in_pad, th), lambda i, n: (0, n)),      # W1
                    pl.BlockSpec((1, th), lambda i, n: (0, n)),           # b1
                ],
                out_specs=pl.BlockSpec((bb, th), lambda i, n: (i, n)),
            ),
            compiler_params=pltpu.CompilerParams(
                dimension_semantics=("parallel", "parallel"),
                vmem_limit_bytes=vmem_limit),
            cost_estimate=cost,
        )(xb, w1, b1)

    return out[:B, :hidden_dim]


# -----------------------------------------------------------------------------
# Reference / params / demo
# -----------------------------------------------------------------------------
def init_params(key, input_dim, hidden_dim, res_conn):
    """Deterministic synthetic parameters.  Stored pre-transposed: (in, out)."""
    k1, k2, k3, k4 = jax.random.split(key, 4)
    s1 = 1.0 / jnp.sqrt(input_dim)
    s2 = 1.0 / jnp.sqrt(hidden_dim)
    params = {
        "w1": jax.random.uniform(k1, (input_dim, hidden_dim), jnp.float32, -s1, s1),
        "b1": jax.random.uniform(k2, (1, hidden_dim), jnp.float32, -s1, s1),
    }
    if res_conn:
        params["w2"] = jax.random.uniform(k3, (hidden_dim, hidden_dim),
                                          jnp.float32, -s2, s2)
        params["b2"] = jax.random.uniform(k4, (1, hidden_dim), jnp.float32, -s2, s2)
    return params


def mlp_ref(x, params, *, res_conn):
    h = jnp.maximum(x @ params["w1"] + params["b1"], 0.0)
    if res_conn:
        return h @ params["w2"] + params["b2"] + x
    return h


if __name__ == "__main__":
    key = jax.random.PRNGKey(0)
    kx, kp, kx2, kp2 = jax.random.split(key, 4)

    # Small shapes consistent with the module (weight-resident fast path).
    batch, input_dim, hidden_dim = 16, 32, 32
    x = jax.random.normal(kx, (batch, input_dim), jnp.float32)

    params = init_params(kp, input_dim, hidden_dim, True)
    out = jax.block_until_ready(mlp_forward(x, params, res_conn=True))
    ref = mlp_ref(x, params, res_conn=True)
    assert out.shape == (batch, hidden_dim)
    # bf16 MXU operands (f32 accumulation) -> loosened tolerance vs f32 reference.
    assert jnp.allclose(out, ref, atol=5e-2, rtol=5e-2), "mismatch (res)"

    params_nr = init_params(kp, input_dim, hidden_dim, False)
    out_nr = jax.block_until_ready(mlp_forward(x, params_nr, res_conn=False))
    ref_nr = mlp_ref(x, params_nr, res_conn=False)
    assert out_nr.shape == (batch, hidden_dim)
    assert jnp.allclose(out_nr.astype(jnp.float32), ref_nr,
                        atol=5e-2, rtol=5e-2), "mismatch (no-res)"

    # Slightly larger shape that exercises the tiled residual path
    # (grid = (2, 3, 3): h-cache reuse, W1 index pinning, K accumulation).
    b2_, d2_ = 48, 384
    x2 = jax.random.normal(kx2, (b2_, d2_), jnp.float32)
    params2 = init_params(kp2, d2_, d2_, True)
    out2 = jax.block_until_ready(
        mlp_forward(x2, params2, res_conn=True, block_batch=32, block_feat=128))
    ref2 = mlp_ref(x2, params2, res_conn=True)
    assert out2.shape == (b2_, d2_)
    assert jnp.allclose(out2, ref2, atol=5e-2, rtol=5e-2), "mismatch (tiled res)"

    print("KERNEL_OK")
</pallas_src>

<mosaic_0001>
module attributes {stable_mosaic.version = 11 : i64} {
  func.func @_mlp_res_kernel(%arg0: i32, %arg1: i32, %arg2: i32, %arg3: memref<16x128xf32, #tpu.memory_space<vmem>>, %arg4: memref<128x128xbf16, #tpu.memory_space<vmem>>, %arg5: memref<1x128xf32, #tpu.memory_space<vmem>>, %arg6: memref<128x128xbf16, #tpu.memory_space<vmem>>, %arg7: memref<1x128xf32, #tpu.memory_space<vmem>>, %arg8: memref<16x128xf32, #tpu.memory_space<vmem>>, %arg9: memref<16x128xbf16, #tpu.memory_space<vmem>>, %arg10: memref<16x128xf32, #tpu.memory_space<vmem>>) attributes {dimension_semantics = [#tpu.dimension_semantics<parallel>, #tpu.dimension_semantics<arbitrary>, #tpu.dimension_semantics<arbitrary>], iteration_bounds = array<i64: 1, 1, 1>, scalar_prefetch = 0 : i64, scratch_operands = 2 : i64, tpu.core_type = #tpu.core_type<tc>, window_params = [{transform_indices = @transform_0, window_bounds = array<i64: 16, 128>}, {transform_indices = @transform_1, window_bounds = array<i64: 128, 128>}, {transform_indices = @transform_2, window_bounds = array<i64: 1, 128>}, {transform_indices = @transform_3, window_bounds = array<i64: 128, 128>}, {transform_indices = @transform_4, window_bounds = array<i64: 1, 128>}, {transform_indices = @transform_5, window_bounds = array<i64: 16, 128>}]} {
    %c128_i32 = arith.constant 128 : i32
    %0 = arith.muli %arg2, %c128_i32 : i32
    %1 = tpu.assume_multiple %0, 128 : i32
    %c0_i32 = arith.constant 0 : i32
    %2 = arith.cmpi eq, %arg1, %c0_i32 : i32
    %3 = arith.extui %2 : i1 to i32
    %c0_i32_0 = arith.constant 0 : i32
    %4 = arith.cmpi ne, %3, %c0_i32_0 : i32
    scf.if %4 {
      %c0_11 = arith.constant 0 : index
      %c0_12 = arith.constant 0 : index
      %18 = vector.load %arg3[%c0_11, %c0_12] : memref<16x128xf32, #tpu.memory_space<vmem>>, vector<16x128xf32>
      %19 = arith.truncf %18 : vector<16x128xf32> to vector<16x128xbf16>
      %c0_13 = arith.constant 0 : index
      %c0_14 = arith.constant 0 : index
      %20 = vector.load %arg4[%c0_13, %c0_14] : memref<128x128xbf16, #tpu.memory_space<vmem>>, vector<128x128xbf16>
      %cst_15 = arith.constant dense<0.000000e+00> : vector<16x128xf32>
      %21 = tpu.matmul %19, %20, %cst_15 {dimension_numbers = #tpu.dot_dimension_numbers<[1], [0], [0], [1], [0, 0, 1, 1], [], []>} : vector<16x128xbf16>, vector<128x128xbf16>, vector<16x128xf32> -> vector<16x128xf32>
      %c0_16 = arith.constant 0 : index
      %c0_17 = arith.constant 0 : index
      %22 = vector.load %arg5[%c0_16, %c0_17] : memref<1x128xf32, #tpu.memory_space<vmem>>, vector<1x128xf32>
      %23 = vector.broadcast %22 : vector<1x128xf32> to vector<16x128xf32>
      %24 = arith.addf %21, %23 : vector<16x128xf32>
      %cst_18 = arith.constant 0.000000e+00 : f32
      %25 = vector.broadcast %cst_18 : f32 to vector<16x128xf32>
      %26 = arith.maximumf %24, %25 : vector<16x128xf32>
      %27 = arith.truncf %26 : vector<16x128xf32> to vector<16x128xbf16>
      %c0_19 = arith.constant 0 : index
      %28 = arith.index_cast %1 : i32 to index
      %29 = vector.load %arg9[%c0_19, %28] : memref<16x128xbf16, #tpu.memory_space<vmem>>, vector<16x128xbf16>
      tpu.vector_store %arg9[%c0_19, %28], %27 {strides = array<i32>} : memref<16x128xbf16, #tpu.memory_space<vmem>>, vector<16x128xbf16>,
    } else {
    }
    %c0_i32_1 = arith.constant 0 : i32
    %5 = arith.cmpi eq, %arg2, %c0_i32_1 : i32
    %6 = arith.extui %5 : i1 to i32
    %c0_i32_2 = arith.constant 0 : i32
    %7 = arith.cmpi ne, %6, %c0_i32_2 : i32
    scf.if %7 {
      %cst_11 = arith.constant 0.000000e+00 : f32
      %18 = vector.broadcast %cst_11 : f32 to vector<16x128xf32>
      %c0_12 = arith.constant 0 : index
      %c0_13 = arith.constant 0 : index
      %19 = vector.load %arg10[%c0_12, %c0_13] : memref<16x128xf32, #tpu.memory_space<vmem>>, vector<16x128xf32>
      tpu.vector_store %arg10[%c0_12, %c0_13], %18 {strides = array<i32>} : memref<16x128xf32, #tpu.memory_space<vmem>>, vector<16x128xf32>,
    } else {
    }
    %c0 = arith.constant 0 : index
    %c0_3 = arith.constant 0 : index
    %8 = vector.load %arg10[%c0, %c0_3] : memref<16x128xf32, #tpu.memory_space<vmem>>, vector<16x128xf32>
    %c0_4 = arith.constant 0 : index
    %9 = arith.index_cast %1 : i32 to index
    %10 = vector.load %arg9[%c0_4, %9] : memref<16x128xbf16, #tpu.memory_space<vmem>>, vector<16x128xbf16>
    %c0_5 = arith.constant 0 : index
    %c0_6 = arith.constant 0 : index
    %11 = vector.load %arg6[%c0_5, %c0_6] : memref<128x128xbf16, #tpu.memory_space<vmem>>, vector<128x128xbf16>
    %cst = arith.constant dense<0.000000e+00> : vector<16x128xf32>
    %12 = tpu.matmul %10, %11, %cst {dimension_numbers = #tpu.dot_dimension_numbers<[1], [0], [0], [1], [0, 0, 1, 1], [], []>} : vector<16x128xbf16>, vector<128x128xbf16>, vector<16x128xf32> -> vector<16x128xf32>
    %13 = arith.addf %8, %12 : vector<16x128xf32>
    %c0_7 = arith.constant 0 : index
    %c0_8 = arith.constant 0 : index
    %14 = vector.load %arg10[%c0_7, %c0_8] : memref<16x128xf32, #tpu.memory_space<vmem>>, vector<16x128xf32>
    tpu.vector_store %arg10[%c0_7, %c0_8], %13 {strides = array<i32>} : memref<16x128xf32, #tpu.memory_space<vmem>>, vector<16x128xf32>,
    %c0_i32_9 = arith.constant 0 : i32
    %15 = arith.cmpi eq, %arg2, %c0_i32_9 : i32
    %16 = arith.extui %15 : i1 to i32
    %c0_i32_10 = arith.constant 0 : i32
    %17 = arith.cmpi ne, %16, %c0_i32_10 : i32
    scf.if %17 {
      %c128_i32_11 = arith.constant 128 : i32
      %18 = arith.muli %arg1, %c128_i32_11 : i32
      %19 = tpu.assume_multiple %18, 128 : i32
      %c0_12 = arith.constant 0 : index
      %20 = arith.index_cast %19 : i32 to index
      %21 = vector.load %arg3[%c0_12, %20] : memref<16x128xf32, #tpu.memory_space<vmem>>, vector<16x128xf32>
      %c0_13 = arith.constant 0 : index
      %c0_14 = arith.constant 0 : index
      %22 = vector.load %arg10[%c0_13, %c0_14] : memref<16x128xf32, #tpu.memory_space<vmem>>, vector<16x128xf32>
      %c0_15 = arith.constant 0 : index
      %c0_16 = arith.constant 0 : index
      %23 = vector.load %arg7[%c0_15, %c0_16] : memref<1x128xf32, #tpu.memory_space<vmem>>, vector<1x128xf32>
      %24 = vector.broadcast %23 : vector<1x128xf32> to vector<16x128xf32>
      %25 = arith.addf %22, %24 : vector<16x128xf32>
      %26 = arith.addf %25, %21 : vector<16x128xf32>
      %c0_17 = arith.constant 0 : index
      %c0_18 = arith.constant 0 : index
      %27 = vector.load %arg8[%c0_17, %c0_18] : memref<16x128xf32, #tpu.memory_space<vmem>>, vector<16x128xf32>
      tpu.vector_store %arg8[%c0_17, %c0_18], %26 {strides = array<i32>} : memref<16x128xf32, #tpu.memory_space<vmem>>, vector<16x128xf32>,
    } else {
    }
    return
  }
  func.func @transform_0(%arg0: i32, %arg1: i32, %arg2: i32) -> (i32, i32) {
    %c0_i32 = arith.constant 0 : i32
    %c0_i32_0 = arith.constant 0 : i32
    return %arg0, %c0_i32 : i32, i32
  }
  func.func @transform_1(%arg0: i32, %arg1: i32, %arg2: i32) -> (i32, i32) {
    %c0_i32 = arith.constant 0 : i32
    %0 = arith.cmpi eq, %arg1, %c0_i32 : i32
    %c0_i32_0 = arith.constant 0 : i32
    %1 = arith.select %0, %arg2, %c0_i32_0 : i32
    %c0_i32_1 = arith.constant 0 : i32
    %c0_i32_2 = arith.constant 0 : i32
    return %c0_i32_1, %1 : i32, i32
  }
  func.func @transform_2(%arg0: i32, %arg1: i32, %arg2: i32) -> (i32, i32) {
    %c0_i32 = arith.constant 0 : i32
    %0 = arith.cmpi eq, %arg1, %c0_i32 : i32
    %c0_i32_0 = arith.constant 0 : i32
    %1 = arith.select %0, %arg2, %c0_i32_0 : i32
    %c0_i32_1 = arith.constant 0 : i32
    %c0_i32_2 = arith.constant 0 : i32
    return %c0_i32_1, %1 : i32, i32
  }
  func.func @transform_3(%arg0: i32, %arg1: i32, %arg2: i32) -> (i32, i32) {
    %c0_i32 = arith.constant 0 : i32
    return %arg2, %arg1 : i32, i32
  }
  func.func @transform_4(%arg0: i32, %arg1: i32, %arg2: i32) -> (i32, i32) {
    %c0_i32 = arith.constant 0 : i32
    %c0_i32_0 = arith.constant 0 : i32
    return %c0_i32, %arg1 : i32, i32
  }
  func.func @transform_5(%arg0: i32, %arg1: i32, %arg2: i32) -> (i32, i32) {
    %c0_i32 = arith.constant 0 : i32
    return %arg0, %arg1 : i32, i32
  }
}

</mosaic_0001>

<llo_original>
// kernel: tpu_custom_call.1
$region0: #{tpu_custom_call.1}
  #allocation0 [shape = 'u32[]', space=smem, size = 0x4, offset = 0x4, fixed_abs, tag = 'smem constant byte address 0x4 - core index']
  #allocation1 [shape = 'u32[144,128]{1,0:T(1,128)}', space=vmem, size = 0x12000, scoped, tag = 'internal scratch']
  #allocation2 [shape = 'bf16[16,128]{1,0:T(16,128)(2,1)}', space=vmem, size = 0x1000, scoped, tag = 'scratch operand']
  #allocation3 [shape = 'f32[16,128]{1,0:T(8,128)}', space=vmem, size = 0x2000, scoped, tag = 'scratch operand']
  %s0 = inlined_call_operand.hbm [shape: f32[16,128], index: 0, kind: input, shape index: {}]
  %s1 = inlined_call_operand.hbm [shape: bf16[128,128], index: 1, kind: input, shape index: {}]
  %s2 = inlined_call_operand.vmem [shape: f32[1,128], index: 2, kind: input, shape index: {}]
  %s3 = inlined_call_operand.hbm [shape: bf16[128,128], index: 3, kind: input, shape index: {}]
  %s4 = inlined_call_operand.vmem [shape: f32[1,128], index: 4, kind: input, shape index: {}]
  %s5 = inlined_call_operand.hbm [shape: f32[16,128], index: 5, kind: output, shape index: {}]
  %s6 = sld [smem:[#allocation0]]
  $region54: #{tpu_custom_call.1} parent=0
    _
  %s8 = ssub.s32 1, %s6
  %s9 = scalar_select 0, %s8, %s6
  $region1: #{tpu_custom_call.1} parent=0
    #allocation4 [shape = 'u8[8192]{0}', space=vmem, size = 0x2000, scoped, tag = 'input window, operand 0, single buffered']
    #allocation5 [shape = 's32[1]{0}', space=sflag, size = 0x4, scoped, tag = 'scoped memory for tpu_custom_call.1']
    #allocation6 [shape = 's32[1]{0}', space=sflag, size = 0x4, scoped, tag = 'scoped memory for tpu_custom_call.1']
    #allocation7 [shape = 'u8[32768]{0}', space=vmem, size = 0x8000, scoped, tag = 'input window, operand 1, single buffered']
    #allocation8 [shape = 's32[1]{0}', space=sflag, size = 0x4, scoped, tag = 'scoped memory for tpu_custom_call.1']
    #allocation9 [shape = 'u8[32768]{0}', space=vmem, size = 0x8000, scoped, tag = 'input window, operand 3, single buffered']
    #allocation10 [shape = 'u8[8192]{0}', space=vmem, size = 0x2000, scoped, tag = 'output window, operand 0, single buffered']
    %10 = vsyncpa [#allocation5], 0
    %11 = vsyncpa [#allocation8], 0
    %12 = vsyncpa [#allocation6], 0
    // Predicated region
    $region2: #{tpu_custom_call.1} parent=1 // pred_check
      _
    $region3: #{tpu_custom_call.1} parent=1 // pred_check_branch
      %14 = sbr.rel (0) target = $region5
    $region4: #{tpu_custom_call.1} parent=1 // pred_region
      %s16 = ssub.s32 256, 256
      %17 = vsyncadd [#allocation5], %s16
      %s18 = sshll.u32 [#allocation4], 4
      %s19 = int_to_ptr.vmem [resolvable:$true] %s18
      %24 = dma.hbm_to_vmem [thread:$0]  %s0, 256, %s19, [#allocation5], 128, 128, 8
    $region5: #{tpu_custom_call.1} parent=1 // pred_fallthru
      _
    // Predicated region
    $region6: #{tpu_custom_call.1} parent=1 // pred_check
      _
    $region7: #{tpu_custom_call.1} parent=1 // pred_check_branch
      %26 = sbr.rel (0) target = $region9
    $region8: #{tpu_custom_call.1} parent=1 // pred_region
      %p27 = scmp.eq.s32.totalorder 0, 0
      %s28 = scalar_select %p27, 0, 0
      %s30 = ssub.s32 1024, 1024
      %31 = vsyncadd [#allocation8], %s30
      %s32 = smul.addr %s28, 64
      %s33 = scalar_lea.hbm %s1, %s32
      %s34 = sshll.u32 [#allocation7], 4
      %s35 = int_to_ptr.vmem [resolvable:$true] %s34
      %40 = dma.hbm_to_vmem [thread:$0]  %s33, 1024, %s35, [#allocation8], 64, 64, 4
    $region9: #{tpu_custom_call.1} parent=1 // pred_fallthru
      _
    // Predicated region
    $region10: #{tpu_custom_call.1} parent=1 // pred_check
      _
    $region11: #{tpu_custom_call.1} parent=1 // pred_check_branch
      %42 = sbr.rel (0) target = $region13
    $region12: #{tpu_custom_call.1} parent=1 // pred_region
      %p43 = scmp.eq.s32.totalorder 0, 0
      %s44 = scalar_select %p43, 0, 0
      %p45 = scmp.lt.s32.totalorder %s44, 0
      %s46 = scalar_select %p45, %s44, 0
      %s47 = scalar_lea.vmem %s2, %s46
      %p48 = scmp.eq.s32.totalorder 0, 0
      %s49 = scalar_select %p48, 0, 0
    $region13: #{tpu_custom_call.1} parent=1 // pred_fallthru
      _
    // Predicated region
    $region14: #{tpu_custom_call.1} parent=1 // pred_check
      _
    $region15: #{tpu_custom_call.1} parent=1 // pred_check_branch
      %51 = sbr.rel (0) target = $region17
    $region16: #{tpu_custom_call.1} parent=1 // pred_region
      %s53 = ssub.s32 1024, 1024
      %54 = vsyncadd [#allocation8], %s53
      %s55 = sshll.u32 [#allocation9], 4
      %s56 = int_to_ptr.vmem [resolvable:$true] %s55
      %61 = dma.hbm_to_vmem [thread:$0]  %s3, 1024, %s56, [#allocation8], 64, 64, 4
    $region17: #{tpu_custom_call.1} parent=1 // pred_fallthru
      _
    // Predicated region
    $region18: #{tpu_custom_call.1} parent=1 // pred_check
      _
    $region19: #{tpu_custom_call.1} parent=1 // pred_check_branch
      %63 = sbr.rel (0) target = $region21
    $region20: #{tpu_custom_call.1} parent=1 // pred_region
      _
    $region21: #{tpu_custom_call.1} parent=1 // pred_fallthru
      _
    // Predicated region
    $region22: #{tpu_custom_call.1} parent=1 // pred_check
      _
    $region23: #{tpu_custom_call.1} parent=1 // pred_check_branch
      %65 = sbr.rel (0) target = $region25
    $region24: #{tpu_custom_call.1} parent=1 // pred_region
      %66 = dma.done [#allocation5], 256
    $region25: #{tpu_custom_call.1} parent=1 // pred_fallthru
      _
    // Predicated region
    $region26: #{tpu_custom_call.1} parent=1 // pred_check
      _
    $region27: #{tpu_custom_call.1} parent=1 // pred_check_branch
      %68 = sbr.rel (0) target = $region29
    $region28: #{tpu_custom_call.1} parent=1 // pred_region
      %69 = dma.done [#allocation8], 1024
    $region29: #{tpu_custom_call.1} parent=1 // pred_fallthru
      _
    // Predicated region
    $region30: #{tpu_custom_call.1} parent=1 // pred_check
      _
    $region31: #{tpu_custom_call.1} parent=1 // pred_check_branch
      %71 = sbr.rel (0) target = $region33
    $region32: #{tpu_custom_call.1} parent=1 // pred_region
      %72 = dma.done [#allocation8], 1024
    $region33: #{tpu_custom_call.1} parent=1 // pred_fallthru
      _
    %p73 = scmp.eq.s32.totalorder 0, 0
    %s74 = scalar_select %p73, 0, 0
    %p75 = scmp.lt.s32.totalorder %s74, 0
    %s76 = scalar_select %p75, %s74, 0
    %s77 = scalar_lea.vmem %s2, %s76
    %p78 = scmp.eq.s32.totalorder 0, 0
    %s79 = scalar_select %p78, 0, 0
    %p80 = scmp.eq.s32.totalorder 0, 0
    %s81 = scalar_select %p80, 0, 0
    %p82 = scmp.lt.s32.totalorder %s81, 0
    %s83 = scalar_select %p82, %s81, 0
    %s84 = scalar_lea.vmem %s2, %s83
    %p85 = scmp.eq.s32.totalorder 0, 0
    %s86 = scalar_select %p85, 0, 0
    %s88 = smul.u32 0, 128
    %p89 = scmp.eq.s32.totalorder 0, 0
    // Predicated region
    $region34: #{tpu_custom_call.1} parent=1 // pred_check
      %p90 = pneg %p89
    $region35: #{tpu_custom_call.1} parent=1 // pred_check_branch
      %92 = sbr.rel (%p90) target = $region37
    $region36: #{tpu_custom_call.1} parent=1 // pred_region
      %v93 = vld [vmem:[#allocation4] sm:$0xff]
      %v94 = vld [vmem:[#allocation4 + $0x8] sm:$0xff]
      %v95 = vpack.c.bf16 %v94, %v93
      %v96 = vld [vmem:[#allocation7] sm:$0xf]
      %v97 = vld [vmem:[#allocation7 + $0x4] sm:$0xf]
      %v98 = vld [vmem:[#allocation7 + $0x8] sm:$0xf]
      %v99 = vld [vmem:[#allocation7 + $0xc] sm:$0xf]
      %v100 = vld [vmem:[#allocation7 + $0x10] sm:$0xf]
      %v101 = vld [vmem:[#allocation7 + $0x14] sm:$0xf]
      %v102 = vld [vmem:[#allocation7 + $0x18] sm:$0xf]
      %v103 = vld [vmem:[#allocation7 + $0x1c] sm:$0xf]
      %v104 = vld [vmem:[#allocation7 + $0x20] sm:$0xf]
      %v105 = vld [vmem:[#allocation7 + $0x24] sm:$0xf]
      %v106 = vld [vmem:[#allocation7 + $0x28] sm:$0xf]
      %v107 = vld [vmem:[#allocation7 + $0x2c] sm:$0xf]
      %v108 = vld [vmem:[#allocation7 + $0x30] sm:$0xf]
      %v109 = vld [vmem:[#allocation7 + $0x34] sm:$0xf]
      %v110 = vld [vmem:[#allocation7 + $0x38] sm:$0xf]
      %v111 = vld [vmem:[#allocation7 + $0x3c] sm:$0xf]
      %v112 = vld [vmem:[%s84] sm:$0x1]
      %v114 = vlaneseq
      %v115 = vshrl.u32 %v114, 7
      %v116 = vsub.s32 0, %v115
      %v117 = vrot.slane %v112, %v116
      %v135 = vunpack.c.l.b16 %v96
      %v136 = vunpack.c.l.b16 %v97
      %v137 = vunpack.c.l.b16 %v98
      %v138 = vunpack.c.l.b16 %v99
      %v139 = vunpack.c.l.b16 %v100
      %v140 = vunpack.c.l.b16 %v101
      %v141 = vunpack.c.l.b16 %v102
      %v142 = vunpack.c.l.b16 %v103
      %v143 = vunpack.c.l.b16 %v104
      %v144 = vunpack.c.l.b16 %v105
      %v145 = vunpack.c.l.b16 %v106
      %v146 = vunpack.c.l.b16 %v107
      %v147 = vunpack.c.l.b16 %v108
      %v148 = vunpack.c.l.b16 %v109
      %v149 = vunpack.c.l.b16 %v110
      %v150 = vunpack.c.l.b16 %v111
      %v151 = vpack.c.b16 %v136, %v135
      %v152 = vpack.c.b16 %v138, %v137
      %v153 = vpack.c.b16 %v140, %v139
      %v154 = vpack.c.b16 %v142, %v141
      %v155 = vpack.c.b16 %v144, %v143
      %v156 = vpack.c.b16 %v146, %v145
      %v157 = vpack.c.b16 %v148, %v147
      %v158 = vpack.c.b16 %v150, %v149
      %167 = vmatprep.subr.bf16.mxu0 0
      %168 = vmatpush1.bf16.msra.mxu0 %v151
      %169 = vmatprep.subr.bf16.mxu0 0
      %170 = vmatpush1.bf16.msra.mxu0 %v152
      %171 = vmatprep.subr.bf16.mxu0 0
      %172 = vmatpush1.bf16.msra.mxu0 %v153
      %173 = vmatprep.subr.bf16.mxu0 0
      %174 = vmatpush1.bf16.msra.mxu0 %v154
      %175 = vmatprep.subr.bf16.mxu0 0
      %176 = vmatpush1.bf16.msra.mxu0 %v155
      %177 = vmatprep.subr.bf16.mxu0 0
      %178 = vmatpush1.bf16.msra.mxu0 %v156
      %179 = vmatprep.subr.bf16.mxu0 0
      %180 = vmatpush1.bf16.msra.mxu0 %v157
      %181 = vmatprep.subr.bf16.mxu0 0
      %182 = vmatpush1.bf16.msra.mxu0 %v158
      %183 = vmatprep.subr.bf16.mxu0 0
      %184 = vmatpush1.bf16.msra.mxu0 0
      %185 = vmatprep.subr.bf16.mxu0 0
      %186 = vmatpush1.bf16.msra.mxu0 0
      %187 = vmatprep.subr.bf16.mxu0 0
      %188 = vmatpush1.bf16.msra.mxu0 0
      %189 = vmatprep.subr.bf16.mxu0 0
      %190 = vmatpush1.bf16.msra.mxu0 0
      %191 = vmatprep.subr.bf16.mxu0 0
      %192 = vmatpush1.bf16.msra.mxu0 0
      %193 = vmatprep.subr.bf16.mxu0 0
      %194 = vmatpush1.bf16.msra.mxu0 0
      %195 = vmatprep.subr.bf16.mxu0 0
      %196 = vmatpush1.bf16.msra.mxu0 0
      %197 = vmatprep.subr.bf16.mxu0 0
      %198 = vmatpush1.bf16.msra.mxu0 0
      %199 = vmatprep.mubr.bf16.mxu0 0
      %200 = vmatmul.mubr.bf16.gmra.mrb[0].mxu0 %v95
      %v201 = vpop.f32.mrb[0].mxu0
      %v202 = vadd.f32 %v117, %v201
      %v203 = vpop.f32.mrb[0].mxu0
      %v204 = vpop.f32.mrb[0].mxu0
      %v205 = vadd.f32 %v117, %v204
      %v206 = vpop.f32.mrb[0].mxu0
      %207 = vdwg.mxu0
      %v208 = vmax.f32 %v202, 0.0
      %v209 = vmax.f32 %v205, 0.0
      %v210 = vpack.c.bf16 %v209, %v208
      %s211 = sshra.s32 %s88, 7
      %s212 = sand.u32 %s88, 127
      %s213 = smul.addr %s211, 8
      %s214 = scalar_lea.vmem [#allocation2], %s213
      %215 = vst [vmem:[%s214] sm:$0xff] %v210
    $region37: #{tpu_custom_call.1} parent=1 // pred_fallthru
      _
    %p216 = scmp.eq.s32.totalorder 0, 0
    // Predicated region
    $region38: #{tpu_custom_call.1} parent=1 // pred_check
      %p217 = pneg %p216
    $region39: #{tpu_custom_call.1} parent=1 // pred_check_branch
      %219 = sbr.rel (%p217) target = $region41
    $region40: #{tpu_custom_call.1} parent=1 // pred_region
      %220 = vst [vmem:[#allocation3] sm:$0xff] 0.0
      %221 = vst [vmem:[#allocation3 + $0x8] sm:$0xff] 0.0
    $region41: #{tpu_custom_call.1} parent=1 // pred_fallthru
      _
    %v222 = vld [vmem:[#allocation3] sm:$0xff]
    %v223 = vld [vmem:[#allocation3 + $0x8] sm:$0xff]
    %s224 = sshra.s32 %s88, 7
    %s225 = sand.u32 %s88, 127
    %s226 = smul.addr %s224, 8
    %s227 = scalar_lea.vmem [#allocation2], %s226
    %v228 = vld [vmem:[%s227] sm:$0xff]
    %v229 = vld [vmem:[#allocation9] sm:$0xf]
    %v230 = vld [vmem:[#allocation9 + $0x4] sm:$0xf]
    %v231 = vld [vmem:[#allocation9 + $0x8] sm:$0xf]
    %v232 = vld [vmem:[#allocation9 + $0xc] sm:$0xf]
    %v233 = vld [vmem:[#allocation9 + $0x10] sm:$0xf]
    %v234 = vld [vmem:[#allocation9 + $0x14] sm:$0xf]
    %v235 = vld [vmem:[#allocation9 + $0x18] sm:$0xf]
    %v236 = vld [vmem:[#allocation9 + $0x1c] sm:$0xf]
    %v237 = vld [vmem:[#allocation9 + $0x20] sm:$0xf]
    %v238 = vld [vmem:[#allocation9 + $0x24] sm:$0xf]
    %v239 = vld [vmem:[#allocation9 + $0x28] sm:$0xf]
    %v240 = vld [vmem:[#allocation9 + $0x2c] sm:$0xf]
    %v241 = vld [vmem:[#allocation9 + $0x30] sm:$0xf]
    %v242 = vld [vmem:[#allocation9 + $0x34] sm:$0xf]
    %v243 = vld [vmem:[#allocation9 + $0x38] sm:$0xf]
    %v244 = vld [vmem:[#allocation9 + $0x3c] sm:$0xf]
    %v261 = vunpack.c.l.b16 %v229
    %v262 = vunpack.c.l.b16 %v230
    %v263 = vunpack.c.l.b16 %v231
    %v264 = vunpack.c.l.b16 %v232
    %v265 = vunpack.c.l.b16 %v233
    %v266 = vunpack.c.l.b16 %v234
    %v267 = vunpack.c.l.b16 %v235
    %v268 = vunpack.c.l.b16 %v236
    %v269 = vunpack.c.l.b16 %v237
    %v270 = vunpack.c.l.b16 %v238
    %v271 = vunpack.c.l.b16 %v239
    %v272 = vunpack.c.l.b16 %v240
    %v273 = vunpack.c.l.b16 %v241
    %v274 = vunpack.c.l.b16 %v242
    %v275 = vunpack.c.l.b16 %v243
    %v276 = vunpack.c.l.b16 %v244
    %v277 = vpack.c.b16 %v262, %v261
    %v278 = vpack.c.b16 %v264, %v263
    %v279 = vpack.c.b16 %v266, %v265
    %v280 = vpack.c.b16 %v268, %v267
    %v281 = vpack.c.b16 %v270, %v269
    %v282 = vpack.c.b16 %v272, %v271
    %v283 = vpack.c.b16 %v274, %v273
    %v284 = vpack.c.b16 %v276, %v275
    %293 = vmatprep.subr.bf16.mxu0 0
    %294 = vmatpush1.bf16.msra.mxu0 %v277
    %295 = vmatprep.subr.bf16.mxu0 0
    %296 = vmatpush1.bf16.msra.mxu0 %v278
    %297 = vmatprep.subr.bf16.mxu0 0
    %298 = vmatpush1.bf16.msra.mxu0 %v279
    %299 = vmatprep.subr.bf16.mxu0 0
    %300 = vmatpush1.bf16.msra.mxu0 %v280
    %301 = vmatprep.subr.bf16.mxu0 0
    %302 = vmatpush1.bf16.msra.mxu0 %v281
    %303 = vmatprep.subr.bf16.mxu0 0
    %304 = vmatpush1.bf16.msra.mxu0 %v282
    %305 = vmatprep.subr.bf16.mxu0 0
    %306 = vmatpush1.bf16.msra.mxu0 %v283
    %307 = vmatprep.subr.bf16.mxu0 0
    %308 = vmatpush1.bf16.msra.mxu0 %v284
    %309 = vmatprep.subr.bf16.mxu0 0
    %310 = vmatpush1.bf16.msra.mxu0 0
    %311 = vmatprep.subr.bf16.mxu0 0
    %312 = vmatpush1.bf16.msra.mxu0 0
    %313 = vmatprep.subr.bf16.mxu0 0
    %314 = vmatpush1.bf16.msra.mxu0 0
    %315 = vmatprep.subr.bf16.mxu0 0
    %316 = vmatpush1.bf16.msra.mxu0 0
    %317 = vmatprep.subr.bf16.mxu0 0
    %318 = vmatpush1.bf16.msra.mxu0 0
    %319 = vmatprep.subr.bf16.mxu0 0
    %320 = vmatpush1.bf16.msra.mxu0 0
    %321 = vmatprep.subr.bf16.mxu0 0
    %322 = vmatpush1.bf16.msra.mxu0 0
    %323 = vmatprep.subr.bf16.mxu0 0
    %324 = vmatpush1.bf16.msra.mxu0 0
    %325 = vmatprep.mubr.bf16.mxu0 0
    %326 = vmatmul.mubr.bf16.gmra.mrb[0].mxu0 %v228
    %v327 = vpop.f32.mrb[0].mxu0
    %v328 = vadd.f32 0.0, %v327
    %v329 = vpop.f32.mrb[0].mxu0
    %v330 = vpop.f32.mrb[0].mxu0
    %v331 = vadd.f32 0.0, %v330
    %v332 = vpop.f32.mrb[0].mxu0
    %333 = vdwg.mxu0
    %v334 = vadd.f32 %v222, %v328
    %v335 = vadd.f32 %v223, %v331
    %336 = vst [vmem:[#allocation3] sm:$0xff] %v334
    %337 = vst [vmem:[#allocation3 + $0x8] sm:$0xff] %v335
    // Predicated region
    $region42: #{tpu_custom_call.1} parent=1 // pred_check
      %p338 = pneg %p216
    $region43: #{tpu_custom_call.1} parent=1 // pred_check_branch
      %340 = sbr.rel (%p338) target = $region45
    $region44: #{tpu_custom_call.1} parent=1 // pred_region
      %s341 = smul.u32 0, 128
      %s342 = sshra.s32 %s341, 7
      %s343 = sand.u32 %s341, 127
      %s344 = scalar_lea.vmem [#allocation4], %s342
      %v345 = vld [vmem:[%s344] sm:$0xff]
      %v346 = vld [vmem:[%s344 + $0x8] sm:$0xff]
      %v347 = vld [vmem:[#allocation3] sm:$0xff]
      %v348 = vld [vmem:[#allocation3 + $0x8] sm:$0xff]
      %v349 = vld [vmem:[%s4] sm:$0x1]
      %v351 = vlaneseq
      %v352 = vshrl.u32 %v351, 7
      %v353 = vsub.s32 0, %v352
      %v354 = vrot.slane %v349, %v353
      %v356 = vadd.f32 %v347, %v354
      %v357 = vadd.f32 %v348, %v354
      %v358 = vadd.f32 %v356, %v345
      %v359 = vadd.f32 %v357, %v346
      %360 = vst [vmem:[#allocation10] sm:$0xff] %v358
      %361 = vst [vmem:[#allocation10 + $0x8] sm:$0xff] %v359
    $region45: #{tpu_custom_call.1} parent=1 // pred_fallthru
      _
    // Predicated region
    $region46: #{tpu_custom_call.1} parent=1 // pred_check
      _
    $region47: #{tpu_custom_call.1} parent=1 // pred_check_branch
      %363 = sbr.rel (0) target = $region49
    $region48: #{tpu_custom_call.1} parent=1 // pred_region
      %s365 = ssub.s32 256, 256
      %366 = vsyncadd [#allocation6], %s365
      %s367 = sshll.u32 [#allocation10], 4
      %s368 = int_to_ptr.vmem [resolvable:$true] %s367
      %373 = dma.vmem_to_hbm [thread:$0]  %s368, 256, %s5, [#allocation6], 128, 128, 8
    $region49: #{tpu_custom_call.1} parent=1 // pred_fallthru
      _
    // Predicated region
    $region50: #{tpu_custom_call.1} parent=1 // pred_check
      _
    $region51: #{tpu_custom_call.1} parent=1 // pred_check_branch
      %375 = sbr.rel (0) target = $region53
    $region52: #{tpu_custom_call.1} parent=1 // pred_region
      %376 = dma.done [#allocation6], 256
    $region53: #{tpu_custom_call.1} parent=1 // pred_fallthru
      _
    %377 = vsyncpa [#allocation5], 1
    %378 = vsyncpa [#allocation8], 1
    %379 = vsyncpa [#allocation6], 1

</llo_original>
